<compile_context>
chip_gen: v5e
topology: v5e:2x2
jax: 0.10.0
libtpu: 0.0.40
codegen_flags: <defaults>
</compile_context>

<pallas_src>
import math

import jax
import jax.numpy as jnp
from jax.experimental import pallas as pl
from jax.experimental.pallas import tpu as pltpu


# Only bother splitting the copy into multiple DMAs when each chunk is at
# least ~1 MiB; below that the copy is latency-dominated and one DMA wins.
_MIN_CHUNK_BYTES = 1 << 20


def _identity_dma_kernel(x_hbm, o_hbm, sem):
    """Forward pass of the abstract BaseModel: pure pass-through.

    Pure HBM->HBM DMA of this grid step's chunk; nothing touches VMEM/vregs.
    """
    i = pl.program_id(0)
    cp = pltpu.make_async_copy(x_hbm.at[i], o_hbm.at[i], sem)
    cp.start()
    cp.wait()


def _pallas_identity_copy(x: jax.Array) -> jax.Array:
    """Materialize a fresh copy of `x` via a Pallas HBM->HBM DMA kernel."""
    orig_shape = x.shape
    total = math.prod(orig_shape) if orig_shape else 1
    if total == 0:
        return x

    # Split into a few equal chunks when the tensor is large so the
    # ("parallel",) grid can shard DMA issue across both v7x TensorCores
    # (no-op on v5e/v6e).  Each step copies one disjoint row of `flat`.
    n_chunks = 1
    for c in (8, 4, 2):
        if total % c == 0 and (total // c) * x.dtype.itemsize >= _MIN_CHUNK_BYTES:
            n_chunks = c
            break

    flat = x.reshape(n_chunks, total // n_chunks)

    out = pl.pallas_call(
        _identity_dma_kernel,
        out_shape=jax.ShapeDtypeStruct(flat.shape, flat.dtype),
        grid_spec=pltpu.PrefetchScalarGridSpec(
            num_scalar_prefetch=0,
            grid=(n_chunks,),
            in_specs=[pl.BlockSpec(memory_space=pl.ANY)],   # raw HBM ref
            out_specs=pl.BlockSpec(memory_space=pl.ANY),    # raw HBM ref
            scratch_shapes=[pltpu.SemaphoreType.DMA(())],
        ),
        compiler_params=pltpu.CompilerParams(
            dimension_semantics=("parallel",),
        ),
    )(flat)
    return out.reshape(orig_shape)


def base_model_forward(x: jax.Array, *, materialize_copy: bool = False) -> jax.Array:
    """Stand-in forward for the abstract BaseModel (identity).

    Default: return the input unchanged (zero HBM traffic — the optimal
    realization of an identity forward).  With `materialize_copy=True` the
    result is produced by the Pallas HBM->HBM DMA kernel, kept as scaffolding
    for concrete subclasses that will add real per-block compute.
    """
    if not materialize_copy:
        return x
    return _pallas_identity_copy(x)


def base_model_str() -> str:
    """Mirror of BaseModel.__str__: module repr + trainable-parameter count.

    BaseModel defines no parameters, so the count is 0.
    """
    params = 0
    return "BaseModel()\nTrainable parameters: {}M".format(params / 1_000_000.0)


if __name__ == "__main__":
    key = jax.random.PRNGKey(0)
    k0, k1 = jax.random.split(key)

    x = jax.random.normal(k0, (2, 4, 16, 16), dtype=jnp.float32)

    # Default path: abstract forward -> identity, no kernel, no HBM traffic.
    y0 = base_model_forward(x)
    assert y0.shape == x.shape and y0.dtype == x.dtype
    assert bool(jnp.all(y0 == x))

    # Pallas DMA path (kernel scaffolding): exact pass-through.
    y = base_model_forward(x, materialize_copy=True)
    jax.block_until_ready(y)
    assert y.shape == x.shape and y.dtype == x.dtype
    assert bool(jnp.all(y == x))

    # Non-lane-aligned element count: handled directly (no pad/slice fallback).
    x2 = jax.random.normal(k1, (3, 5, 7), dtype=jnp.float32)
    y2 = base_model_forward(x2, materialize_copy=True)
    jax.block_until_ready(y2)
    assert y2.shape == x2.shape and bool(jnp.all(y2 == x2))

    _ = base_model_str()  # parameter-count path (0 params), exercised for parity

    print("KERNEL_OK")
</pallas_src>

<mosaic_0001>
module attributes {stable_mosaic.version = 11 : i64} {
  func.func @_identity_dma_kernel(%arg0: i32, %arg1: memref<1x2048xf32, #tpu.memory_space<any>>, %arg2: memref<1x2048xf32, #tpu.memory_space<any>>, %arg3: memref<!tpu.dma_semaphore, #tpu.memory_space<semaphore_mem>>) attributes {dimension_semantics = [#tpu.dimension_semantics<parallel>], iteration_bounds = array<i64: 1>, scalar_prefetch = 0 : i64, scratch_operands = 1 : i64, tpu.core_type = #tpu.core_type<tc>, window_params = [{}, {}]} {
    %c0_i32 = arith.constant 0 : i32
    %0 = tpu.memref_slice %arg1[%arg0, %c0_i32] : memref<1x2048xf32, #tpu.memory_space<any>> -> memref<1x2048xf32, #tpu.memory_space<any>>
    %1 = tpu.memref_squeeze %0 : memref<1x2048xf32, #tpu.memory_space<any>> -> memref<2048xf32, #tpu.memory_space<any>>
    %c0_i32_0 = arith.constant 0 : i32
    %2 = tpu.memref_slice %arg2[%arg0, %c0_i32_0] : memref<1x2048xf32, #tpu.memory_space<any>> -> memref<1x2048xf32, #tpu.memory_space<any>>
    %3 = tpu.memref_squeeze %2 : memref<1x2048xf32, #tpu.memory_space<any>> -> memref<2048xf32, #tpu.memory_space<any>>
    tpu.enqueue_dma source(%1 : memref<2048xf32, #tpu.memory_space<any>>) target(%3 : memref<2048xf32, #tpu.memory_space<any>>) target_semaphore(%arg3 : memref<!tpu.dma_semaphore, #tpu.memory_space<semaphore_mem>>)
    %c0_i32_1 = arith.constant 0 : i32
    %4 = tpu.memref_slice %arg1[%arg0, %c0_i32_1] : memref<1x2048xf32, #tpu.memory_space<any>> -> memref<1x2048xf32, #tpu.memory_space<any>>
    %5 = tpu.memref_squeeze %4 : memref<1x2048xf32, #tpu.memory_space<any>> -> memref<2048xf32, #tpu.memory_space<any>>
    %c0_i32_2 = arith.constant 0 : i32
    %6 = tpu.memref_slice %arg2[%arg0, %c0_i32_2] : memref<1x2048xf32, #tpu.memory_space<any>> -> memref<1x2048xf32, #tpu.memory_space<any>>
    %7 = tpu.memref_squeeze %6 : memref<1x2048xf32, #tpu.memory_space<any>> -> memref<2048xf32, #tpu.memory_space<any>>
    tpu.wait_dma2 semaphore(%arg3 : memref<!tpu.dma_semaphore, #tpu.memory_space<semaphore_mem>>) src(%5 : memref<2048xf32, #tpu.memory_space<any>>) dst(%7 : memref<2048xf32, #tpu.memory_space<any>>)
    return
  }
}

</mosaic_0001>

<llo_original>
// kernel: tpu_custom_call.1
$region0: #{tpu_custom_call.1}
  #allocation0 [shape = 'u32[]', space=smem, size = 0x4, offset = 0x4, fixed_abs, tag = 'smem constant byte address 0x4 - core index']
  #allocation1 [shape = 'u32[72,128]{1,0:T(1,128)}', space=vmem, size = 0x9000, scoped, tag = 'internal scratch']
  #allocation2 [shape = 's32[1]{0}', space=sflag, size = 0x4, scoped, tag = 'scratch operand']
  #allocation3 [shape = 's32[]', space=sflag, size = 0x4, offset = 0, fixed_abs, tag = 'sflag constant byte address 0x0 - dummy sync flag']
  #allocation4 [shape = 'u32[0]{0}', space=smem, size = 0, offset = 0, fixed_abs, tag = 'smem constant byte address 0x0 - null']
  %s0 = inlined_call_operand.hbm [shape: f32[1,2048], index: 0, kind: input, shape index: {}]
  %s1 = inlined_call_operand.hbm [shape: f32[1,2048], index: 1, kind: output, shape index: {}]
  %s2 = sld [smem:[#allocation0]]
  $region2: #{tpu_custom_call.1} parent=0
    _
  %s4 = ssub.s32 1, %s2
  %s5 = scalar_select 0, %s4, %s2
  %s6 = smul.u32 0, 16
  %s7 = scalar_lea.hbm %s0, %s6
  %s8 = scalar_lea.hbm %s1, %s6
  %s10 = sshll.u32 1, 14
  %s11 = sxor.u32 4294967295, %s10
  %s13 = sshll.u32 %s7, 4
  %s14 = int_to_ptr.hbm [resolvable:$true] %s13
  %s15 = sshll.u32 %s8, 4
  %s16 = int_to_ptr.hbm [resolvable:$true] %s15
  %19 = dma.general %s14, 256, %s16, [#allocation2], [#allocation3], [#allocation4], 0, 0
  %21 = dma.done [#allocation2], 256
  %22 = vsyncmov [#allocation2]
  %s23 = vpop.sfrf %22
  %p24 = scmp.eq.s32.totalorder %s23, 0
  %p25 = pneg %p24
  %27 = shalt.err (%p25)

</llo_original>
